<compile_context>
chip_gen: v7x
topology: tpu7x:2x2x1
jax: 0.10.0
libtpu: 0.0.40
codegen_flags: <defaults>
</compile_context>

<pallas_src>
import jax
import jax.numpy as jnp
from jax import lax
from jax.experimental import pallas as pl
from jax.experimental.pallas import tpu as pltpu


def _pool_avg_kernel(x_ref, nwins_ref, w_ref, b_ref, o_ref, acc_ref):
    k = pl.program_id(1)  # time-block index (reduction axis)

    @pl.when(k == 0)
    def _init():
        acc_ref[...] = jnp.zeros_like(acc_ref)

    x = x_ref[...]                       # (tb, tt, D) f32
    n = nwins_ref[...]                   # (tb, 1)     f32
    tb, tt, _ = x.shape

    # wgt[b, t] = 1/n[b] if (global t) < n[b] else 0
    # (n_wins == 0 would give inf/NaN, same as torch.div in the reference module)
    t_idx = k * tt + lax.broadcasted_iota(jnp.int32, (tb, tt), 1)   # (tb, tt)
    inv_n = pl.reciprocal(n, approx=True)                           # EUP slot, ~free
    wgt = jnp.where(t_idx < n.astype(jnp.int32), inv_n, 0.0)        # (tb, tt)

    # masked, pre-scaled partial sum over this time block -> running average
    acc_ref[...] += jnp.sum(x * wgt[:, :, None], axis=1)            # (tb, D)

    @pl.when(k == pl.num_programs(1) - 1)
    def _finalize():
        out = jnp.dot(acc_ref[...], w_ref[...],
                      preferred_element_type=jnp.float32)           # (tb, O_pad)
        o_ref[...] = (out + b_ref[...]).astype(o_ref.dtype)


def _pick_tile(n, unit, cap):
    """Largest tile <= cap that divides n and is a multiple of `unit`
    (falls back to the full extent)."""
    if n <= cap:
        return n
    for t in range(int(cap), 0, -1):
        if n % t == 0 and t % unit == 0:
            return t
    return n


def pool_avg(x, n_wins, w_t, b, *, tb=None, tt=None):
    """Masked average pooling over time + Linear.

    x:      (B, T, D) f32
    n_wins: (B, 1)    f32 -- number of valid time steps per example
    w_t:    (D, O)    f32 -- Linear weight, pre-transposed
    b:      (1, O)    f32 -- Linear bias
    returns (B, O) f32
    """
    B, T, D = x.shape
    O = w_t.shape[1]

    # Lane-dense output: pad O up to a multiple of 128 (unmasked vst, full MXU N).
    O_pad = 128 * pl.cdiv(O, 128)
    if O_pad != O:
        w_t = jnp.pad(w_t, ((0, 0), (0, O_pad - O)))
        b = jnp.pad(b, ((0, 0), (0, O_pad - O)))
    # TODO(synk): D (=32 here) stays lane-sparse on load; padding x's feature dim
    # in HBM was judged not worth the extra copy for this memory-bound reduction.

    # Tile choice: keep the double-buffered x tile <= ~8 MiB so it also fits
    # v7x's 64 MiB VMEM, while staying as large as possible for HBM roofline.
    if tb is None:
        tb = _pick_tile(B, 8, 128)
    if tt is None:
        max_tt = max(8, (8 << 20) // max(1, tb * D * x.dtype.itemsize))
        tt = _pick_tile(T, 8, max_tt)
    assert B % tb == 0 and T % tt == 0, "tile sizes must divide (B, T)"

    grid = (B // tb, T // tt)

    # Explicit scoped-VMEM budget (default is only 32 MiB; v7x has 64 MiB physical).
    raw_tile_bytes = (tb * tt * D + tb + D * O_pad + O_pad + tb * O_pad + tb * D) * 4
    vmem_limit = int(min(48 << 20, max(16 << 20, 4 * raw_tile_bytes)))

    grid_spec = pltpu.PrefetchScalarGridSpec(
        num_scalar_prefetch=0,
        grid=grid,
        in_specs=[
            pl.BlockSpec((tb, tt, D), lambda i, k: (i, k, 0)),   # x
            pl.BlockSpec((tb, 1), lambda i, k: (i, 0)),          # n_wins
            pl.BlockSpec((D, O_pad), lambda i, k: (0, 0)),       # W^T (padded)
            pl.BlockSpec((1, O_pad), lambda i, k: (0, 0)),       # bias (padded)
        ],
        out_specs=pl.BlockSpec((tb, O_pad), lambda i, k: (i, 0)),
        scratch_shapes=[pltpu.VMEM((tb, D), jnp.float32)],
    )

    out_pad = pl.pallas_call(
        _pool_avg_kernel,
        out_shape=jax.ShapeDtypeStruct((B, O_pad), x.dtype),
        grid_spec=grid_spec,
        compiler_params=pltpu.CompilerParams(
            dimension_semantics=("parallel", "arbitrary"),
            vmem_limit_bytes=vmem_limit,
        ),
    )(x, n_wins, w_t, b)

    return out_pad[:, :O]


def pool_avg_ref(x, n_wins, w_t, b):
    """Plain-JAX reference mirroring the PyTorch PoolAvg.forward."""
    T = x.shape[1]
    valid = jnp.arange(T)[None, :] < n_wins.astype(jnp.int32)     # (B, T)
    xm = jnp.where(valid[:, :, None], x, 0.0)
    avg = xm.sum(axis=1) / n_wins                                 # (B, D)
    return avg @ w_t + b


if __name__ == "__main__":
    # Small shapes consistent with the module; large enough to exercise a
    # (2, 2) grid (batch-parallel x time-reduction) with tb = tt = 8.
    B, T, D, O = 16, 16, 32, 16

    key = jax.random.PRNGKey(0)
    kx, kw, kb, kn = jax.random.split(key, 4)

    x = jax.random.normal(kx, (B, T, D), dtype=jnp.float32)

    # Deterministic Linear(d_input=D, output_size=O) init (PyTorch-style bound).
    bound = 1.0 / (D ** 0.5)
    w = jax.random.uniform(kw, (O, D), minval=-bound, maxval=bound, dtype=jnp.float32)
    bias = jax.random.uniform(kb, (O,), minval=-bound, maxval=bound, dtype=jnp.float32)
    w_t = w.T                       # (D, O) for the kernel matmul
    b2 = bias[None, :]              # (1, O)

    # n_wins: number of valid time-steps per example (1..T), as float like the module.
    n_wins = jax.random.randint(kn, (B,), 1, T + 1).astype(jnp.float32)[:, None]  # (B, 1)

    out = pool_avg(x, n_wins, w_t, b2, tb=8, tt=8)
    out = jax.block_until_ready(out)

    ref = pool_avg_ref(x, n_wins, w_t, b2)
    assert out.shape == (B, O)
    # Tolerance relaxed slightly because 1/n uses the EUP approximate reciprocal.
    assert jnp.allclose(out, ref, atol=1e-3, rtol=1e-3), "mismatch vs JAX reference"

    print("KERNEL_OK")
</pallas_src>

<mosaic_0001>
module attributes {stable_mosaic.version = 11 : i64} {
  func.func @_pool_avg_kernel(%arg0: i32, %arg1: i32, %arg2: memref<8x8x32xf32, #tpu.memory_space<vmem>>, %arg3: memref<8x1xf32, #tpu.memory_space<vmem>>, %arg4: memref<32x128xf32, #tpu.memory_space<vmem>>, %arg5: memref<1x128xf32, #tpu.memory_space<vmem>>, %arg6: memref<8x128xf32, #tpu.memory_space<vmem>>, %arg7: memref<8x32xf32, #tpu.memory_space<vmem>>) attributes {dimension_semantics = [#tpu.dimension_semantics<parallel>, #tpu.dimension_semantics<arbitrary>], iteration_bounds = array<i64: 2, 2>, scalar_prefetch = 0 : i64, scratch_operands = 1 : i64, tpu.core_type = #tpu.core_type<tc>, window_params = [{transform_indices = @transform_0, window_bounds = array<i64: 8, 8, 32>}, {transform_indices = @transform_1, window_bounds = array<i64: 8, 1>}, {pipeline_mode = #tpu.pipeline_mode<synchronous>, transform_indices = @transform_2, window_bounds = array<i64: 32, 128>}, {pipeline_mode = #tpu.pipeline_mode<synchronous>, transform_indices = @transform_3, window_bounds = array<i64: 1, 128>}, {transform_indices = @transform_4, window_bounds = array<i64: 8, 128>}]} {
    %c0_i32 = arith.constant 0 : i32
    %0 = arith.cmpi eq, %arg1, %c0_i32 : i32
    %1 = arith.extui %0 : i1 to i32
    %c0_i32_0 = arith.constant 0 : i32
    %2 = arith.cmpi ne, %1, %c0_i32_0 : i32
    scf.if %2 {
      %cst_11 = arith.constant 0.000000e+00 : f32
      %27 = vector.broadcast %cst_11 : f32 to vector<8x32xf32>
      %c0_12 = arith.constant 0 : index
      %c0_13 = arith.constant 0 : index
      %28 = vector.load %arg7[%c0_12, %c0_13] : memref<8x32xf32, #tpu.memory_space<vmem>>, vector<8x32xf32>
      tpu.vector_store %arg7[%c0_12, %c0_13], %27 {strides = array<i32>} : memref<8x32xf32, #tpu.memory_space<vmem>>, vector<8x32xf32>,
    } else {
    }
    %c0 = arith.constant 0 : index
    %c0_1 = arith.constant 0 : index
    %c0_2 = arith.constant 0 : index
    %3 = vector.load %arg2[%c0, %c0_1, %c0_2] : memref<8x8x32xf32, #tpu.memory_space<vmem>>, vector<8x8x32xf32>
    %c0_3 = arith.constant 0 : index
    %c0_4 = arith.constant 0 : index
    %4 = vector.load %arg3[%c0_3, %c0_4] : memref<8x1xf32, #tpu.memory_space<vmem>>, vector<8x1xf32>
    %c8_i32 = arith.constant 8 : i32
    %5 = arith.muli %arg1, %c8_i32 : i32
    %6 = tpu.iota {dimensions = array<i32: 1>} : vector<8x8xi32>
    %7 = vector.broadcast %5 : i32 to vector<8x8xi32>
    %8 = arith.addi %7, %6 : vector<8x8xi32>
    %9 = tpu.reciprocal %4 {approx = true} : vector<8x1xf32> -> vector<8x1xf32>
    %10 = arith.fptosi %4 : vector<8x1xf32> to vector<8x1xi32>
    %11 = vector.broadcast %10 : vector<8x1xi32> to vector<8x8xi32>
    %12 = arith.cmpi slt, %8, %11 : vector<8x8xi32>
    %cst = arith.constant 0.000000e+00 : f32
    %13 = vector.shape_cast %9 : vector<8x1xf32> to vector<8x1xf32>
    %14 = vector.broadcast %13 : vector<8x1xf32> to vector<8x8xf32>
    %15 = vector.broadcast %cst : f32 to vector<8x8xf32>
    %16 = arith.select %12, %14, %15 : vector<8x8xi1>, vector<8x8xf32>
    %c0_5 = arith.constant 0 : index
    %c0_6 = arith.constant 0 : index
    %17 = vector.load %arg7[%c0_5, %c0_6] : memref<8x32xf32, #tpu.memory_space<vmem>>, vector<8x32xf32>
    %18 = vector.shape_cast %16 : vector<8x8xf32> to vector<8x8x1xf32>
    %19 = vector.broadcast %18 : vector<8x8x1xf32> to vector<8x8x32xf32>
    %20 = arith.mulf %3, %19 : vector<8x8x32xf32>
    %cst_7 = arith.constant dense<0.000000e+00> : vector<8x32xf32>
    %21 = vector.multi_reduction <add>, %20, %cst_7 [1] : vector<8x8x32xf32> to vector<8x32xf32>
    %22 = arith.addf %17, %21 : vector<8x32xf32>
    %c0_8 = arith.constant 0 : index
    %c0_9 = arith.constant 0 : index
    %23 = vector.load %arg7[%c0_8, %c0_9] : memref<8x32xf32, #tpu.memory_space<vmem>>, vector<8x32xf32>
    tpu.vector_store %arg7[%c0_8, %c0_9], %22 {strides = array<i32>} : memref<8x32xf32, #tpu.memory_space<vmem>>, vector<8x32xf32>,
    %c1_i32 = arith.constant 1 : i32
    %24 = arith.cmpi eq, %arg1, %c1_i32 : i32
    %25 = arith.extui %24 : i1 to i32
    %c0_i32_10 = arith.constant 0 : i32
    %26 = arith.cmpi ne, %25, %c0_i32_10 : i32
    scf.if %26 {
      %c0_11 = arith.constant 0 : index
      %c0_12 = arith.constant 0 : index
      %27 = vector.load %arg7[%c0_11, %c0_12] : memref<8x32xf32, #tpu.memory_space<vmem>>, vector<8x32xf32>
      %c0_13 = arith.constant 0 : index
      %c0_14 = arith.constant 0 : index
      %28 = vector.load %arg4[%c0_13, %c0_14] : memref<32x128xf32, #tpu.memory_space<vmem>>, vector<32x128xf32>
      %cst_15 = arith.constant dense<0.000000e+00> : vector<8x128xf32>
      %29 = tpu.matmul %27, %28, %cst_15 {dimension_numbers = #tpu.dot_dimension_numbers<[1], [0], [0], [1], [0, 0, 1, 1], [], []>} : vector<8x32xf32>, vector<32x128xf32>, vector<8x128xf32> -> vector<8x128xf32>
      %c0_16 = arith.constant 0 : index
      %c0_17 = arith.constant 0 : index
      %30 = vector.load %arg5[%c0_16, %c0_17] : memref<1x128xf32, #tpu.memory_space<vmem>>, vector<1x128xf32>
      %31 = vector.broadcast %30 : vector<1x128xf32> to vector<8x128xf32>
      %32 = arith.addf %29, %31 : vector<8x128xf32>
      %c0_18 = arith.constant 0 : index
      %c0_19 = arith.constant 0 : index
      %33 = vector.load %arg6[%c0_18, %c0_19] : memref<8x128xf32, #tpu.memory_space<vmem>>, vector<8x128xf32>
      tpu.vector_store %arg6[%c0_18, %c0_19], %32 {strides = array<i32>} : memref<8x128xf32, #tpu.memory_space<vmem>>, vector<8x128xf32>,
    } else {
    }
    return
  }
  func.func @transform_0(%arg0: i32, %arg1: i32) -> (i32, i32, i32) {
    %c0_i32 = arith.constant 0 : i32
    %c0_i32_0 = arith.constant 0 : i32
    return %arg0, %arg1, %c0_i32 : i32, i32, i32
  }
  func.func @transform_1(%arg0: i32, %arg1: i32) -> (i32, i32) {
    %c0_i32 = arith.constant 0 : i32
    %c0_i32_0 = arith.constant 0 : i32
    return %arg0, %c0_i32 : i32, i32
  }
  func.func @transform_2(%arg0: i32, %arg1: i32) -> (i32, i32) {
    %c0_i32 = arith.constant 0 : i32
    %c0_i32_0 = arith.constant 0 : i32
    %c0_i32_1 = arith.constant 0 : i32
    return %c0_i32, %c0_i32_0 : i32, i32
  }
  func.func @transform_3(%arg0: i32, %arg1: i32) -> (i32, i32) {
    %c0_i32 = arith.constant 0 : i32
    %c0_i32_0 = arith.constant 0 : i32
    %c0_i32_1 = arith.constant 0 : i32
    return %c0_i32, %c0_i32_0 : i32, i32
  }
  func.func @transform_4(%arg0: i32, %arg1: i32) -> (i32, i32) {
    %c0_i32 = arith.constant 0 : i32
    %c0_i32_0 = arith.constant 0 : i32
    return %arg0, %c0_i32 : i32, i32
  }
}

</mosaic_0001>

<llo_original>
// kernel: tpu_custom_call.1
$region0: #{tpu_custom_call.1}
  #allocation0 [shape = 'u32[]', space=smem, size = 0x4, offset = 0x4, fixed_abs, tag = 'smem constant byte address 0x4 - core index']
  #allocation1 [shape = 'u32[144,128]{1,0:T(1,128)}', space=vmem, size = 0x12000, scoped, tag = 'internal scratch']
  #allocation2 [shape = 'f32[8,32]{1,0:T(8,128)}', space=vmem, size = 0x1000, scoped, tag = 'scratch operand']
  %s0 = inlined_call_operand.hbm [shape: f32[16,16,32], index: 0, kind: input, shape index: {}]
  %s1 = inlined_call_operand.vmem [shape: f32[16,1], index: 1, kind: input, shape index: {}]
  %s2 = inlined_call_operand.hbm [shape: f32[32,128], index: 2, kind: input, shape index: {}]
  %s3 = inlined_call_operand.vmem [shape: f32[1,128], index: 3, kind: input, shape index: {}]
  %s4 = inlined_call_operand.hbm [shape: f32[16,128], index: 4, kind: output, shape index: {}]
  %s5 = sld [smem:[#allocation0]]
  $region65: #{tpu_custom_call.1} parent=0
    _
  %s7 = ssub.s32 1, %s5
  %s8 = scalar_select 0, %s7, %s5
  $region1: #{tpu_custom_call.1} parent=0
    #allocation3 [shape = 'u8[65536]{0}', space=vmem, size = 0x10000, scoped, tag = 'input window, operand 0']
    #allocation4 [shape = 's32[2]{0}', space=sflag, size = 0x8, scoped, tag = 'scoped memory for tpu_custom_call.1']
    #allocation5 [shape = 's32[2]{0}', space=sflag, size = 0x8, scoped, tag = 'scoped memory for tpu_custom_call.1']
    #allocation6 [shape = 'u8[16384]{0}', space=vmem, size = 0x4000, scoped, tag = 'input window, operand 2, single buffered']
    #allocation7 [shape = 's32[1]{0}', space=sflag, size = 0x4, scoped, tag = 'scoped memory for tpu_custom_call.1']
    #allocation8 [shape = 'u8[8192]{0}', space=vmem, size = 0x2000, scoped, tag = 'output window, operand 0']
    %9 = vsyncpa [#allocation4], 0
    %s10 = scalar_lea.sflag [#allocation4], 1
    %11 = vsyncpa %s10, 0
    %12 = vsyncpa [#allocation7], 0
    %13 = vsyncpa [#allocation5], 0
    %s14 = scalar_lea.sflag [#allocation5], 1
    %15 = vsyncpa %s14, 0
    loop: start=0, step=1, limit=6
    $region2: #{tpu_custom_call.1} parent=1 // loop_pre_header
      _
    $region3: #{tpu_custom_call.1} parent=1 // loop_header
      %s17 = sphi 0, %s21
      %p18 = scmp.ge.s32.totalorder %s17, 6
      %s24 = sphi 0, %s36
      %s25 = sphi 0, %s32
      %s26 = sphi 0, %s24
      %s27 = sphi 0, %s25
      %s28 = sphi 0, %s26
      %s29 = sphi 0, %s27
      %s41 = sphi 0, %s43
      %s44 = sphi 0, %s41
      %s45 = sphi 0, %s44
      %s61 = sphi 0, %s45
      %s67 = sphi 0, %s69
      %s70 = sphi 0, %s67
      %s71 = sphi 0, %s70
      %s87 = sphi 0, %s71
      %s91 = sphi 0, %s91
      %s93 = sphi 0, %s91
      %s94 = sphi 0, %s93
      %s108 = sphi 0, %s94
      %s112 = sphi 0, %s112
      %s114 = sphi 0, %s112
      %s115 = sphi 0, %s114
      %s129 = sphi 0, %s115
      %s135 = sphi 0, %s137
      %s138 = sphi 0, %s135
      %s139 = sphi 0, %s138
      %s155 = sphi 0, %s139
    $region4: #{tpu_custom_call.1} parent=1 // loop_header_branch
      %20 = sbr.rel (%p18) target = $region8
    $region5: #{tpu_custom_call.1} parent=1 // loop_body
      %s22 = ssub.s32 %s17, 1
      %s23 = ssub.s32 %s17, 2
      %s30 = sadd.s32 1, %s25
      %p31 = scmp.ge.s32.totalorder %s30, 2
      %s32 = scalar_select %p31, 0, %s30
      %s33 = sadd.s32 1, %s24
      %s34 = scalar_select %p31, %s33, %s24
      %p35 = scmp.ge.s32.totalorder %s34, 2
      %s36 = scalar_select %p35, 0, %s34
      %s37 = ssub.s32 %s24, %s36
      %s38 = ssub.s32 %s25, %s32
      %s39 = sor.u32 %s37, %s38
      %p40 = scmp.eq.s32.totalorder %s39, 0
      %s42 = sadd.s32 %s41, 1
      %s43 = scalar_select %p40, %s41, %s42
      %p46 = pneg %p40
      %p47 = scmp.eq.s32.totalorder %s17, 3
      %p48 = por %p46, %p47
      %p49 = scmp.ne.s32.totalorder %s41, %s44
      %p50 = scmp.eq.s32.totalorder %s17, 0
      %p51 = por %p49, %p50
      %p52 = scmp.ne.s32.totalorder %s41, %s44
      %p53 = scmp.eq.s32.totalorder %s22, 3
      %p54 = por %p52, %p53
      %p55 = scmp.ne.s32.totalorder %s44, %s45
      %p56 = scmp.eq.s32.totalorder %s22, 0
      %p57 = por %p55, %p56
      %p58 = scmp.ne.s32.totalorder %s44, %s45
      %p59 = scmp.eq.s32.totalorder %s23, 3
      %p60 = por %p58, %p59
      %p62 = scmp.ne.s32.totalorder %s45, %s61
      %p63 = scmp.eq.s32.totalorder %s23, 0
      %p64 = por %p62, %p63
      %s65 = ssub.s32 %s24, %s36
      %p66 = scmp.eq.s32.totalorder %s65, 0
      %s68 = sadd.s32 %s67, 1
      %s69 = scalar_select %p66, %s67, %s68
      %p72 = pneg %p66
      %p73 = scmp.eq.s32.totalorder %s17, 3
      %p74 = por %p72, %p73
      %p75 = scmp.ne.s32.totalorder %s67, %s70
      %p76 = scmp.eq.s32.totalorder %s17, 0
      %p77 = por %p75, %p76
      %p78 = scmp.ne.s32.totalorder %s67, %s70
      %p79 = scmp.eq.s32.totalorder %s22, 3
      %p80 = por %p78, %p79
      %p81 = scmp.ne.s32.totalorder %s70, %s71
      %p82 = scmp.eq.s32.totalorder %s22, 0
      %p83 = por %p81, %p82
      %p84 = scmp.ne.s32.totalorder %s70, %s71
      %p85 = scmp.eq.s32.totalorder %s23, 3
      %p86 = por %p84, %p85
      %p88 = scmp.ne.s32.totalorder %s71, %s87
      %p89 = scmp.eq.s32.totalorder %s23, 0
      %p90 = por %p88, %p89
      %s92 = sadd.s32 %s91, 1
      %p95 = scmp.eq.s32.totalorder %s17, 3
      %p96 = scmp.ne.s32.totalorder %s91, %s93
      %p97 = scmp.eq.s32.totalorder %s17, 0
      %p98 = por %p96, %p97
      %p99 = scmp.ne.s32.totalorder %s91, %s93
      %p100 = scmp.eq.s32.totalorder %s22, 3
      %p101 = por %p99, %p100
      %p102 = scmp.ne.s32.totalorder %s93, %s94
      %p103 = scmp.eq.s32.totalorder %s22, 0
      %p104 = por %p102, %p103
      %p105 = scmp.ne.s32.totalorder %s93, %s94
      %p106 = scmp.eq.s32.totalorder %s23, 3
      %p107 = por %p105, %p106
      %p109 = scmp.ne.s32.totalorder %s94, %s108
      %p110 = scmp.eq.s32.totalorder %s23, 0
      %p111 = por %p109, %p110
      %s113 = sadd.s32 %s112, 1
      %p116 = scmp.eq.s32.totalorder %s17, 3
      %p117 = scmp.ne.s32.totalorder %s112, %s114
      %p118 = scmp.eq.s32.totalorder %s17, 0
      %p119 = por %p117, %p118
      %p120 = scmp.ne.s32.totalorder %s112, %s114
      %p121 = scmp.eq.s32.totalorder %s22, 3
      %p122 = por %p120, %p121
      %p123 = scmp.ne.s32.totalorder %s114, %s115
      %p124 = scmp.eq.s32.totalorder %s22, 0
      %p125 = por %p123, %p124
      %p126 = scmp.ne.s32.totalorder %s114, %s115
      %p127 = scmp.eq.s32.totalorder %s23, 3
      %p128 = por %p126, %p127
      %p130 = scmp.ne.s32.totalorder %s115, %s129
      %p131 = scmp.eq.s32.totalorder %s23, 0
      %p132 = por %p130, %p131
      %s133 = ssub.s32 %s24, %s36
      %p134 = scmp.eq.s32.totalorder %s133, 0
      %s136 = sadd.s32 %s135, 1
      %s137 = scalar_select %p134, %s135, %s136
      %p140 = pneg %p134
      %p141 = scmp.eq.s32.totalorder %s17, 3
      %p142 = por %p140, %p141
      %p143 = scmp.ne.s32.totalorder %s135, %s138
      %p144 = scmp.eq.s32.totalorder %s17, 0
      %p145 = por %p143, %p144
      %p146 = scmp.ne.s32.totalorder %s135, %s138
      %p147 = scmp.eq.s32.totalorder %s22, 3
      %p148 = por %p146, %p147
      %p149 = scmp.ne.s32.totalorder %s138, %s139
      %p150 = scmp.eq.s32.totalorder %s22, 0
      %p151 = por %p149, %p150
      %p152 = scmp.ne.s32.totalorder %s138, %s139
      %p153 = scmp.eq.s32.totalorder %s23, 3
      %p154 = por %p152, %p153
      %p156 = scmp.ne.s32.totalorder %s139, %s155
      %p157 = scmp.eq.s32.totalorder %s23, 0
      %p158 = por %p156, %p157
      %p159 = scmp.le.s32.totalorder 1, %s17
      %p160 = scmp.lt.s32.totalorder %s17, 5
      %p161 = pnand %p159, %p160
      %p162 = pneg %p161
      // Predicated region
      $region9: #{tpu_custom_call.1} parent=5 // pred_check
        _
      $region10: #{tpu_custom_call.1} parent=5 // pred_check_branch
        %164 = sbr.rel (%p161) target = $region12
      $region11: #{tpu_custom_call.1} parent=5 // pred_region
        %s165 = ssub.s32 %s17, 1
        // Predicated region
        $region13: #{tpu_custom_call.1} parent=11 // pred_check
          %p166 = pneg %p104
        $region14: #{tpu_custom_call.1} parent=11 // pred_check_branch
          %168 = sbr.rel (%p166) target = $region16
        $region15: #{tpu_custom_call.1} parent=11 // pred_region
          %s170 = ssub.s32 512, 512
          %171 = vsyncadd [#allocation7], %s170
          %s172 = sshll.u32 [#allocation6], 4
          %s173 = int_to_ptr.vmem [resolvable:$true] %s172
          %178 = dma.hbm_to_vmem [thread:$0]  %s2, 512, %s173, [#allocation7], 128, 128, 8
        $region16: #{tpu_custom_call.1} parent=11 // pred_fallthru
          _
        // Predicated region
        $region17: #{tpu_custom_call.1} parent=11 // pred_check
          %p179 = pneg %p125
        $region18: #{tpu_custom_call.1} parent=11 // pred_check_branch
          %181 = sbr.rel (%p179) target = $region20
        $region19: #{tpu_custom_call.1} parent=11 // pred_region
          _
        $region20: #{tpu_custom_call.1} parent=11 // pred_fallthru
          _
      $region12: #{tpu_custom_call.1} parent=5 // pred_fallthru
        _
      %p182 = scmp.lt.s32.totalorder %s17, 4
      // Predicated region
      $region21: #{tpu_custom_call.1} parent=5 // pred_check
        %p183 = pneg %p182
      $region22: #{tpu_custom_call.1} parent=5 // pred_check_branch
        %185 = sbr.rel (%p183) target = $region24
      $region23: #{tpu_custom_call.1} parent=5 // pred_region
        // Predicated region
        $region25: #{tpu_custom_call.1} parent=23 // pred_check
          %p186 = pneg %p51
        $region26: #{tpu_custom_call.1} parent=23 // pred_check_branch
          %188 = sbr.rel (%p186) target = $region28
        $region27: #{tpu_custom_call.1} parent=23 // pred_region
          %s189 = sand.u32 %s41, 1
          %s190 = scalar_lea.sflag [#allocation4], %s189
          %s191 = sand.u32 %s41, 1
          %s192 = smul.addr %s191, 64
          %s193 = scalar_lea.vmem [#allocation3], %s192
          %s194 = smul.u32 8, %s24
          %s196 = ssub.s32 1024, 1024
          %197 = vsyncadd %s190, %s196
          %s198 = smul.addr %s194, 2
          %s199 = sadd.s32 %s25, %s198
          %s200 = smul.addr %s199, 128
          %s201 = scalar_lea.hbm %s0, %s200
          %s202 = sshll.u32 %s193, 4
          %s203 = int_to_ptr.vmem [resolvable:$true] %s202
          %208 = dma.hbm_to_vmem [thread:$0]  %s201, 1024, %s203, %s190, 256, 128, 8
        $region28: #{tpu_custom_call.1} parent=23 // pred_fallthru
          _
        // Predicated region
        $region29: #{tpu_custom_call.1} parent=23 // pred_check
          %p209 = pneg %p77
        $region30: #{tpu_custom_call.1} parent=23 // pred_check_branch
          %211 = sbr.rel (%p209) target = $region32
        $region31: #{tpu_custom_call.1} parent=23 // pred_region
          %p212 = scmp.lt.s32.totalorder %s24, 1
          %s213 = scalar_select %p212, %s24, 1
          %s214 = smul.addr %s213, 8
          %s215 = scalar_lea.vmem %s1, %s214
        $region32: #{tpu_custom_call.1} parent=23 // pred_fallthru
          _
      $region24: #{tpu_custom_call.1} parent=5 // pred_fallthru
        _
      %p216 = scmp.le.s32.totalorder 1, %s17
      %p217 = scmp.lt.s32.totalorder %s17, 5
      %p218 = pnand %p216, %p217
      %p219 = pneg %p218
      // Predicated region
      $region33: #{tpu_custom_call.1} parent=5 // pred_check
        _
      $region34: #{tpu_custom_call.1} parent=5 // pred_check_branch
        %221 = sbr.rel (%p218) target = $region36
      $region35: #{tpu_custom_call.1} parent=5 // pred_region
        %s222 = ssub.s32 %s17, 1
        %s223 = sand.u32 %s44, 1
        %s224 = scalar_lea.sflag [#allocation4], %s223
        %s225 = sand.u32 %s44, 1
        %s226 = smul.addr %s225, 64
        %s227 = scalar_lea.vmem [#allocation3], %s226
        // Predicated region
        $region37: #{tpu_custom_call.1} parent=35 // pred_check
          %p228 = pneg %p57
        $region38: #{tpu_custom_call.1} parent=35 // pred_check_branch
          %230 = sbr.rel (%p228) target = $region40
        $region39: #{tpu_custom_call.1} parent=35 // pred_region
          %231 = dma.done %s224, 1024
        $region40: #{tpu_custom_call.1} parent=35 // pred_fallthru
          _
        // Predicated region
        $region41: #{tpu_custom_call.1} parent=35 // pred_check
          %p232 = pneg %p104
        $region42: #{tpu_custom_call.1} parent=35 // pred_check_branch
          %234 = sbr.rel (%p232) target = $region44
        $region43: #{tpu_custom_call.1} parent=35 // pred_region
          %235 = dma.done [#allocation7], 512
        $region44: #{tpu_custom_call.1} parent=35 // pred_fallthru
          _
        %s236 = sand.u32 %s44, 1
        %s237 = scalar_lea.sflag [#allocation4], %s236
        %s238 = sand.u32 %s44, 1
        %s239 = smul.addr %s238, 64
        %s240 = scalar_lea.vmem [#allocation3], %s239
        %p241 = pneg %p57
        %p242 = pneg %p54
        %p243 = scmp.lt.s32.totalorder %s26, 1
        %s244 = scalar_select %p243, %s26, 1
        %s245 = smul.addr %s244, 8
        %s246 = scalar_lea.vmem %s1, %s245
        %p247 = pneg %p83
        %p248 = pneg %p80
        %p249 = pneg %p104
        %p250 = pneg %p101
        %p251 = pneg %p125
        %p252 = pneg %p122
        %p253 = pneg %p151
        %p254 = pneg %p148
        %s255 = sand.u32 %s138, 1
        %s256 = scalar_lea.sflag [#allocation5], %s255
        %s257 = sand.u32 %s138, 1
        %s258 = smul.addr %s257, 8
        %s259 = scalar_lea.vmem [#allocation8], %s258
        %s260 = smul.u32 8, %s26
        %p261 = scmp.lt.s32.totalorder %s26, 1
        %s262 = scalar_select %p261, %s26, 1
        %s263 = smul.addr %s262, 8
        %s264 = scalar_lea.vmem %s1, %s263
        %p265 = scmp.eq.s32.totalorder %s27, 0
        // Predicated region
        $region45: #{tpu_custom_call.1} parent=35 // pred_check
          %p266 = pneg %p265
        $region46: #{tpu_custom_call.1} parent=35 // pred_check_branch
          %268 = sbr.rel (%p266) target = $region48
        $region47: #{tpu_custom_call.1} parent=35 // pred_region
          %vm269 = vcmask 261120
          %270 = vst.msk [vmem:[#allocation2] sm:$0xff] %vm269, 0.0
        $region48: #{tpu_custom_call.1} parent=35 // pred_fallthru
          _
        %v271 = vld [vmem:[%s227] sm:$0xff]
        %v272 = vld [vmem:[%s227 + $0x8] sm:$0xff]
        %v273 = vld [vmem:[%s227 + $0x10] sm:$0xff]
        %v274 = vld [vmem:[%s227 + $0x18] sm:$0xff]
        %v275 = vld [vmem:[%s227 + $0x20] sm:$0xff]
        %v276 = vld [vmem:[%s227 + $0x28] sm:$0xff]
        %v277 = vld [vmem:[%s227 + $0x30] sm:$0xff]
        %v278 = vld [vmem:[%s227 + $0x38] sm:$0xff]
        %v279 = vld [vmem:[%s264] sm:$0xff]
        %s280 = smul.u32 %s27, 8
        %v281 = vlaneseq
        %v282 = vand.u32 %v281, 127
        %v283 = vstv %s280
        %v284 = vadd.s32 %v283, %v282
        %v285 = vrcp.pop %v279
        %v286 = vcvt.f32.s32.to.zero.pseudo %v279
        %287 = vset.pattern.permute.xlu0 0
        %288 = vperm.xlu0 %287, %v286
        %v289 = vpop.permute.xlu0 %288
        %vm290 = vcmp.lt.s32.totalorder %v284, %v289
        %292 = vset.pattern.permute.xlu0 0
        %293 = vperm.xlu0 %292, %v285
        %v294 = vpop.permute.xlu0 %293
        %v296 = vsel %vm290, %v294, 0.0
        %v297 = vld [vmem:[#allocation2] sm:$0xff]
        %v298 = vlaneseq
        %v299 = vshrl.u32 %v298, 7
        %v300 = vsub.s32 0, %v299
        %v301 = vrot.slane %v296, %v300
        %303 = vbcast.lane.b32.xlu0 %v301, 256
        %v304 = vpop.permute.xlu0 %303
        %v305 = vlaneseq
        %v306 = vshrl.u32 %v305, 7
        %v307 = vsub.s32 1, %v306
        %v308 = vrot.slane %v296, %v307
        %310 = vbcast.lane.b32.xlu0 %v308, 256
        %v311 = vpop.permute.xlu0 %310
        %v312 = vlaneseq
        %v313 = vshrl.u32 %v312, 7
        %v314 = vsub.s32 2, %v313
        %v315 = vrot.slane %v296, %v314
        %317 = vbcast.lane.b32.xlu0 %v315, 256
        %v318 = vpop.permute.xlu0 %317
        %v319 = vlaneseq
        %v320 = vshrl.u32 %v319, 7
        %v321 = vsub.s32 3, %v320
        %v322 = vrot.slane %v296, %v321
        %324 = vbcast.lane.b32.xlu0 %v322, 256
        %v325 = vpop.permute.xlu0 %324
        %v326 = vlaneseq
        %v327 = vshrl.u32 %v326, 7
        %v328 = vsub.s32 4, %v327
        %v329 = vrot.slane %v296, %v328
        %331 = vbcast.lane.b32.xlu0 %v329, 256
        %v332 = vpop.permute.xlu0 %331
        %v333 = vlaneseq
        %v334 = vshrl.u32 %v333, 7
        %v335 = vsub.s32 5, %v334
        %v336 = vrot.slane %v296, %v335
        %338 = vbcast.lane.b32.xlu0 %v336, 256
        %v339 = vpop.permute.xlu0 %338
        %v340 = vlaneseq
        %v341 = vshrl.u32 %v340, 7
        %v342 = vsub.s32 6, %v341
        %v343 = vrot.slane %v296, %v342
        %345 = vbcast.lane.b32.xlu0 %v343, 256
        %v346 = vpop.permute.xlu0 %345
        %v347 = vlaneseq
        %v348 = vshrl.u32 %v347, 7
        %v349 = vsub.s32 7, %v348
        %v350 = vrot.slane %v296, %v349
        %352 = vbcast.lane.b32.xlu0 %v350, 256
        %v353 = vpop.permute.xlu0 %352
        %v354 = vmul.f32 %v271, %v304
        %v355 = vmul.f32 %v272, %v311
        %v356 = vmul.f32 %v273, %v318
        %v357 = vmul.f32 %v274, %v325
        %v358 = vmul.f32 %v275, %v332
        %v359 = vmul.f32 %v276, %v339
        %v360 = vmul.f32 %v277, %v346
        %v361 = vmul.f32 %v278, %v353
        %vm362 = vcmask 261120
        %v363 = vsel %vm362, %v354, 0.0
        %v364 = vrot.slane %v363, 4
        %v365 = vadd.f32 %v363, %v364
        %v366 = vrot.slane %v365, 2
        %v367 = vadd.f32 %v365, %v366
        %v368 = vrot.slane %v367, 1
        %v369 = vadd.f32 %v367, %v368
        %v370 = vsel %vm362, %v355, 0.0
        %v371 = vrot.slane %v370, 4
        %v372 = vadd.f32 %v370, %v371
        %v373 = vrot.slane %v372, 2
        %v374 = vadd.f32 %v372, %v373
        %v375 = vrot.slane %v374, 1
        %v376 = vadd.f32 %v374, %v375
        %v377 = vsel %vm362, %v356, 0.0
        %v378 = vrot.slane %v377, 4
        %v379 = vadd.f32 %v377, %v378
        %v380 = vrot.slane %v379, 2
        %v381 = vadd.f32 %v379, %v380
        %v382 = vrot.slane %v381, 1
        %v383 = vadd.f32 %v381, %v382
        %v384 = vsel %vm362, %v357, 0.0
        %v385 = vrot.slane %v384, 4
        %v386 = vadd.f32 %v384, %v385
        %v387 = vrot.slane %v386, 2
        %v388 = vadd.f32 %v386, %v387
        %v389 = vrot.slane %v388, 1
        %v390 = vadd.f32 %v388, %v389
        %v391 = vsel %vm362, %v358, 0.0
        %v392 = vrot.slane %v391, 4
        %v393 = vadd.f32 %v391, %v392
        %v394 = vrot.slane %v393, 2
        %v395 = vadd.f32 %v393, %v394
        %v396 = vrot.slane %v395, 1
        %v397 = vadd.f32 %v395, %v396
        %v398 = vsel %vm362, %v359, 0.0
        %v399 = vrot.slane %v398, 4
        %v400 = vadd.f32 %v398, %v399
        %v401 = vrot.slane %v400, 2
        %v402 = vadd.f32 %v400, %v401
        %v403 = vrot.slane %v402, 1
        %v404 = vadd.f32 %v402, %v403
        %v405 = vsel %vm362, %v360, 0.0
        %v406 = vrot.slane %v405, 4
        %v407 = vadd.f32 %v405, %v406
        %v408 = vrot.slane %v407, 2
        %v409 = vadd.f32 %v407, %v408
        %v410 = vrot.slane %v409, 1
        %v411 = vadd.f32 %v409, %v410
        %v412 = vsel %vm362, %v361, 0.0
        %v413 = vrot.slane %v412, 4
        %v414 = vadd.f32 %v412, %v413
        %v415 = vrot.slane %v414, 2
        %v416 = vadd.f32 %v414, %v415
        %v417 = vrot.slane %v416, 1
        %v418 = vadd.f32 %v416, %v417
        %vm427 = vcmask 1041409
        %v428 = vsel %vm427, %v376, %v369
        %vm429 = vcmask 1042434
        %v430 = vsel %vm429, %v383, %v428
        %vm431 = vcmask 1043459
        %v432 = vsel %vm431, %v390, %v430
        %vm433 = vcmask 1044484
        %v434 = vsel %vm433, %v397, %v432
        %vm435 = vcmask 1045509
        %v436 = vsel %vm435, %v404, %v434
        %vm437 = vcmask 1046534
        %v438 = vsel %vm437, %v411, %v436
        %vm439 = vcmask 1047559
        %v440 = vsel %vm439, %v418, %v438
        %v442 = vadd.f32 %v297, %v440
        %443 = vst.msk [vmem:[#allocation2] sm:$0xff] %vm362, %v442
        %p444 = scmp.eq.s32.totalorder %s27, 1
        // Predicated region
        $region49: #{tpu_custom_call.1} parent=35 // pred_check
          %p445 = pneg %p444
        $region50: #{tpu_custom_call.1} parent=35 // pred_check_branch
          %447 = sbr.rel (%p445) target = $region52
        $region51: #{tpu_custom_call.1} parent=35 // pred_region
          %v448 = vld [vmem:[#allocation2] sm:$0xff]
          %v449 = vld [vmem:[#allocation6] sm:$0xff]
          %v450 = vld [vmem:[#allocation6 + $0x8] sm:$0xff]
          %v451 = vld [vmem:[#allocation6 + $0x10] sm:$0xff]
          %v452 = vld [vmem:[#allocation6 + $0x18] sm:$0xff]
          %v453 = vld [vmem:[%s3] sm:$0x1]
          %v455 = vlaneseq
          %v456 = vshrl.u32 %v455, 7
          %v457 = vsub.s32 0, %v456
          %v458 = vrot.slane %v453, %v457
          %v461 = vsel %vm362, %v448, 0
          %463 = vmatprep.subr.mxu0 0.0
          %464 = vmatpush1.msra.mxu0 %v449
          %465 = vmatprep.subr.mxu0 0.0
          %466 = vmatpush1.msra.mxu0 %v450
          %467 = vmatprep.subr.mxu0 0.0
          %468 = vmatpush1.msra.mxu0 %v451
          %469 = vmatprep.subr.mxu0 0.0
          %470 = vmatpush1.msra.mxu0 %v452
          %471 = vmatprep.subr.mxu0 0.0
          %472 = vmatpush1.msra.mxu0 0.0
          %473 = vmatprep.subr.mxu0 0.0
          %474 = vmatpush1.msra.mxu0 0.0
          %475 = vmatprep.subr.mxu0 0.0
          %476 = vmatpush1.msra.mxu0 0.0
          %477 = vmatprep.subr.mxu0 0.0
          %478 = vmatpush1.msra.mxu0 0.0
          %479 = vmatprep.subr.mxu0 0.0
          %480 = vmatpush1.msra.mxu0 0.0
          %481 = vmatprep.subr.mxu0 0.0
          %482 = vmatpush1.msra.mxu0 0.0
          %483 = vmatprep.subr.mxu0 0.0
          %484 = vmatpush1.msra.mxu0 0.0
          %485 = vmatprep.subr.mxu0 0.0
          %486 = vmatpush1.msra.mxu0 0.0
          %487 = vmatprep.subr.mxu0 0.0
          %488 = vmatpush1.msra.mxu0 0.0
          %489 = vmatprep.subr.mxu0 0.0
          %490 = vmatpush1.msra.mxu0 0.0
          %491 = vmatprep.subr.mxu0 0.0
          %492 = vmatpush1.msra.mxu0 0.0
          %493 = vmatprep.subr.mxu0 0.0
          %494 = vmatpush1.msra.mxu0 0.0
          %495 = vmatprep.subr.mxu0 0.0
          %496 = vmatpush1.msra.mxu0 0.0
          %497 = vmatprep.subr.mxu0 0.0
          %498 = vmatpush1.msra.mxu0 0.0
          %499 = vmatprep.subr.mxu0 0.0
          %500 = vmatpush1.msra.mxu0 0.0
          %501 = vmatprep.subr.mxu0 0.0
          %502 = vmatpush1.msra.mxu0 0.0
          %503 = vmatprep.subr.mxu0 0.0
          %504 = vmatpush1.msra.mxu0 0.0
          %505 = vmatprep.subr.mxu0 0.0
          %506 = vmatpush1.msra.mxu0 0.0
          %507 = vmatprep.subr.mxu0 0.0
          %508 = vmatpush1.msra.mxu0 0.0
          %509 = vmatprep.subr.mxu0 0.0
          %510 = vmatpush1.msra.mxu0 0.0
          %511 = vmatprep.subr.mxu0 0.0
          %512 = vmatpush1.msra.mxu0 0.0
          %513 = vmatprep.subr.mxu0 0.0
          %514 = vmatpush1.msra.mxu0 0.0
          %515 = vmatprep.subr.mxu0 0.0
          %516 = vmatpush1.msra.mxu0 0.0
          %517 = vmatprep.subr.mxu0 0.0
          %518 = vmatpush1.msra.mxu0 0.0
          %519 = vmatprep.subr.mxu0 0.0
          %520 = vmatpush1.msra.mxu0 0.0
          %521 = vmatprep.subr.mxu0 0.0
          %522 = vmatpush1.msra.mxu0 0.0
          %523 = vmatprep.subr.mxu0 0.0
          %524 = vmatpush1.msra.mxu0 0.0
          %525 = vmatprep.subr.mxu0 0.0
          %526 = vmatpush1.msra.mxu0 0.0
          %527 = vmatprep.mubr.f32.mxu0 0.0
          %528 = vmatmul.mubr.f32.gmra.mrb[0].mxu0 %v461
          %v529 = vpop.f32.mrb[0].mxu0
          %v530 = vadd.f32 %v458, %v529
          %v531 = vpop.f32.mrb[0].mxu0
          %532 = vdwg.mxu0
          %533 = vst [vmem:[%s259] sm:$0xff] %v530
        $region52: #{tpu_custom_call.1} parent=35 // pred_fallthru
          _
        %s534 = sand.u32 %s138, 1
        %s535 = scalar_lea.sflag [#allocation5], %s534
        %s536 = sand.u32 %s138, 1
        %s537 = smul.addr %s536, 8
        %s538 = scalar_lea.vmem [#allocation8], %s537
        // Predicated region
        $region53: #{tpu_custom_call.1} parent=35 // pred_check
          %p539 = pneg %p148
        $region54: #{tpu_custom_call.1} parent=35 // pred_check_branch
          %541 = sbr.rel (%p539) target = $region56
        $region55: #{tpu_custom_call.1} parent=35 // pred_region
          %s543 = ssub.s32 128, 128
          %544 = vsyncadd %s535, %s543
          %s545 = smul.addr %s26, 128
          %s546 = scalar_lea.hbm %s4, %s545
          %s548 = sshll.u32 %s538, 4
          %s549 = int_to_ptr.vmem [resolvable:$true] %s548
          %551 = dma.vmem_to_hbm [thread:$0]  %s549, 128, %s546, %s535
        $region56: #{tpu_custom_call.1} parent=35 // pred_fallthru
          _
      $region36: #{tpu_custom_call.1} parent=5 // pred_fallthru
        _
      %p552 = scmp.le.s32.totalorder 2, %s17
      // Predicated region
      $region57: #{tpu_custom_call.1} parent=5 // pred_check
        %p553 = pneg %p552
      $region58: #{tpu_custom_call.1} parent=5 // pred_check_branch
        %555 = sbr.rel (%p553) target = $region60
      $region59: #{tpu_custom_call.1} parent=5 // pred_region
        %s556 = ssub.s32 %s17, 2
        // Predicated region
        $region61: #{tpu_custom_call.1} parent=59 // pred_check
          %p557 = pneg %p154
        $region62: #{tpu_custom_call.1} parent=59 // pred_check_branch
          %559 = sbr.rel (%p557) target = $region64
        $region63: #{tpu_custom_call.1} parent=59 // pred_region
          %s560 = sand.u32 %s139, 1
          %s561 = scalar_lea.sflag [#allocation5], %s560
          %s562 = sand.u32 %s139, 1
          %s563 = smul.addr %s562, 8
          %s564 = scalar_lea.vmem [#allocation8], %s563
          %565 = dma.done %s561, 128
        $region64: #{tpu_custom_call.1} parent=59 // pred_fallthru
          _
      $region60: #{tpu_custom_call.1} parent=5 // pred_fallthru
        _
    $region6: #{tpu_custom_call.1} parent=1 // loop_footer
      %s21 = sadd.s32 1, %s17
    $region7: #{tpu_custom_call.1} parent=1 // loop_footer_branch
      %16 = sbr.rel target = $region3
    $region8: #{tpu_custom_call.1} parent=1 // loop_exit
      _
    %566 = vsyncpa [#allocation4], 1
    %s567 = scalar_lea.sflag [#allocation4], 1
    %568 = vsyncpa %s567, 1
    %569 = vsyncpa [#allocation7], 1
    %570 = vsyncpa [#allocation5], 1
    %s571 = scalar_lea.sflag [#allocation5], 1
    %572 = vsyncpa %s571, 1

</llo_original>
